<compile_context>
chip_gen: v5e
topology: v5e:2x2
jax: 0.10.0
libtpu: 0.0.40
codegen_flags: <defaults>
</compile_context>

<pallas_src>
import functools

import jax
import jax.numpy as jnp
from jax.experimental import pallas as pl
from jax.experimental.pallas import tpu as pltpu

# Module hyper-parameters (from the PyTorch source).
BLOCK_SIZE = 8        # max sequence length (tril buffer size)
N_EMBD = 384          # C
HEAD_SIZE = 64        # head_size for the synthetic instantiation


def _head_kernel(x_ref, wqkv_ref, mask_ref, o_ref, *, head_size, compute_dtype):
    """One grid step processes a block of BB batch elements (BB*T rows on the MXU)."""
    BB, T, C = x_ref.shape
    H = head_size

    # Merge the leading (batch, seq) dims -> (BB*T, C). Minor dim unchanged: layout-trivial.
    x2d = x_ref[...].reshape(BB * T, C)
    w = wqkv_ref[...]                                   # (C, 3H) fused [Wq | Wk | Wv]

    if compute_dtype is not None:
        x2d = x2d.astype(compute_dtype)
        w = w.astype(compute_dtype)

    # Single fused QKV projection on the MXU, f32 accumulation (dominant FLOPs).
    qkv = jnp.dot(x2d, w, preferred_element_type=jnp.float32)   # (BB*T, 3H) f32

    q = qkv[:, 0 * H:1 * H].reshape(BB, T, H)
    k = qkv[:, 1 * H:2 * H].reshape(BB, T, H)
    v = qkv[:, 2 * H:3 * H].reshape(BB, T, H)
    if compute_dtype is not None:
        q = q.astype(compute_dtype)
        k = k.astype(compute_dtype)
        v = v.astype(compute_dtype)

    # Scaled attention scores: batched q . k^T, contracting the last dims directly
    # (no explicit transpose of k). Scale + additive causal mask fused on the tiny
    # (BB, T, T) score tensor; mask_ref is the module's tril buffer as 0 / -inf.
    scale = float(H) ** -0.5
    wei = jnp.einsum('bqd,bkd->bqk', q, k,
                     preferred_element_type=jnp.float32)        # (BB, T, T) f32
    wei = wei * scale + mask_ref[...]                           # (T, T) broadcasts over BB

    # Numerically stable softmax; masked lanes are -inf -> exp() == 0.
    wei = wei - jnp.max(wei, axis=-1, keepdims=True)
    e = jnp.exp(wei)
    p = e * pl.reciprocal(jnp.sum(e, axis=-1, keepdims=True), approx=True)

    # (Dropout == identity in eval mode.)

    if compute_dtype is not None:
        p = p.astype(compute_dtype)
    out = jnp.einsum('bqk,bkd->bqd', p, v,
                     preferred_element_type=jnp.float32)        # (BB, T, H) f32

    # Single whole-block store.
    o_ref[...] = out.astype(o_ref.dtype)


def _pick_batch_block(B, T, target_rows=256):
    """Largest divisor of B such that BB*T ~ target MXU rows, keeping >=2 grid steps when B>=2."""
    target_bb = max(1, target_rows // max(T, 1))
    bb = 1
    for cand in range(1, min(B, target_bb) + 1):
        if B % cand == 0:
            bb = cand
    # Keep at least 2 grid steps so the batch axis can shard across v7x's 2 TensorCores.
    if B >= 2 and B // bb < 2:
        for cand in range(min(B // 2, target_bb), 0, -1):
            if B % cand == 0:
                bb = cand
                break
    return bb


def head_forward(x, wq, wk, wv, *, batch_block=None, compute_dtype=None):
    """x: (B, T, C) float32; wq/wk/wv: (C, H) float32 (pre-transposed nn.Linear weights).

    compute_dtype: optional dtype (e.g. jnp.bfloat16) for the matmul operands;
                   accumulation stays f32.
    """
    B, T, C = x.shape
    H = wq.shape[1]

    # Fuse the three projections into one (C, 3H) weight -> one MXU matmul per step.
    wqkv = jnp.concatenate([wq, wk, wv], axis=1)

    # Additive causal mask == the module's `tril` buffer (0 where allowed, -inf above diag).
    tril = jnp.tril(jnp.ones((T, T), dtype=bool))
    mask = jnp.where(tril, 0.0, -jnp.inf).astype(jnp.float32)

    BB = batch_block if batch_block is not None else _pick_batch_block(B, T)
    assert B % BB == 0, f"batch {B} must be divisible by batch block {BB}"

    kernel = functools.partial(_head_kernel, head_size=H, compute_dtype=compute_dtype)
    return pl.pallas_call(
        kernel,
        out_shape=jax.ShapeDtypeStruct((B, T, H), x.dtype),
        grid_spec=pltpu.PrefetchScalarGridSpec(
            num_scalar_prefetch=0,
            grid=(B // BB,),
            in_specs=[
                pl.BlockSpec((BB, T, C), lambda b: (b, 0, 0)),   # BB batch rows per step
                pl.BlockSpec((C, 3 * H), lambda b: (0, 0)),      # fused Wqkv, VMEM-resident
                pl.BlockSpec((T, T), lambda b: (0, 0)),          # additive causal mask (tril)
            ],
            out_specs=pl.BlockSpec((BB, T, H), lambda b: (b, 0, 0)),
        ),
        compiler_params=pltpu.CompilerParams(
            dimension_semantics=("parallel",)),
    )(x, wqkv, mask)


def head_reference(x, wq, wk, wv):
    """Pure-JAX reference matching the PyTorch forward (eval mode)."""
    q = x @ wq
    k = x @ wk
    v = x @ wv
    wei = (q @ jnp.swapaxes(k, -2, -1)) * (k.shape[-1] ** -0.5)
    T = x.shape[1]
    tril = jnp.tril(jnp.ones((T, T), dtype=bool))
    wei = jnp.where(tril, wei, -jnp.inf)
    wei = jax.nn.softmax(wei, axis=-1)
    return wei @ v


if __name__ == "__main__":
    key = jax.random.PRNGKey(0)
    kx, kq, kk, kv, kx2 = jax.random.split(key, 5)

    T, C, H = BLOCK_SIZE, N_EMBD, HEAD_SIZE

    # nn.Linear(C, H, bias=False) weight is (H, C); we store the transpose (C, H)
    # so the kernel computes x @ W, identical to PyTorch's x @ weight.T.
    scale = 1.0 / jnp.sqrt(jnp.float32(C))
    wq = jax.random.uniform(kq, (C, H), jnp.float32, -scale, scale)
    wk = jax.random.uniform(kk, (C, H), jnp.float32, -scale, scale)
    wv = jax.random.uniform(kv, (C, H), jnp.float32, -scale, scale)

    # Small instantiation matching the module (B=2, T=block_size=8, C=n_embd=384, H=64).
    x_small = jax.random.normal(kx, (2, T, C), dtype=jnp.float32)
    out_small = jax.block_until_ready(head_forward(x_small, wq, wk, wv))
    ref_small = head_reference(x_small, wq, wk, wv)
    assert out_small.shape == (2, T, H)
    # Tolerance slightly relaxed vs exact f32 because the softmax denominator uses the EUP
    # approximate reciprocal.
    assert jnp.allclose(out_small, ref_small, atol=5e-3, rtol=5e-3), "f32 kernel mismatch (B=2)"

    # Larger batch: exercises the batch-blocked path (BB=32 -> 256 MXU rows/step, grid of 2).
    x_big = jax.random.normal(kx2, (64, T, C), dtype=jnp.float32)
    out_big = jax.block_until_ready(head_forward(x_big, wq, wk, wv))
    ref_big = head_reference(x_big, wq, wk, wv)
    assert jnp.allclose(out_big, ref_big, atol=5e-3, rtol=5e-3), "f32 kernel mismatch (B=64)"

    # bf16 matmul operands (f32 accumulation) for MXU throughput on v6e/v7x; looser tolerance.
    out_bf16 = jax.block_until_ready(
        head_forward(x_big, wq, wk, wv, compute_dtype=jnp.bfloat16))
    assert jnp.allclose(out_bf16, ref_big, atol=5e-2, rtol=5e-2), "bf16 kernel mismatch (B=64)"

    print("KERNEL_OK")
</pallas_src>

<mosaic_0001>
module attributes {stable_mosaic.version = 11 : i64} {
  func.func @_head_kernel(%arg0: i32, %arg1: memref<1x8x384xf32, #tpu.memory_space<vmem>>, %arg2: memref<384x192xf32, #tpu.memory_space<vmem>>, %arg3: memref<8x8xf32, #tpu.memory_space<vmem>>, %arg4: memref<1x8x64xf32, #tpu.memory_space<vmem>>) attributes {dimension_semantics = [#tpu.dimension_semantics<parallel>], iteration_bounds = array<i64: 2>, scalar_prefetch = 0 : i64, scratch_operands = 0 : i64, tpu.core_type = #tpu.core_type<tc>, window_params = [{transform_indices = @transform_0, window_bounds = array<i64: 1, 8, 384>}, {pipeline_mode = #tpu.pipeline_mode<synchronous>, transform_indices = @transform_1, window_bounds = array<i64: 384, 192>}, {pipeline_mode = #tpu.pipeline_mode<synchronous>, transform_indices = @transform_2, window_bounds = array<i64: 8, 8>}, {transform_indices = @transform_3, window_bounds = array<i64: 1, 8, 64>}]} {
    %c0 = arith.constant 0 : index
    %c0_0 = arith.constant 0 : index
    %c0_1 = arith.constant 0 : index
    %0 = vector.load %arg1[%c0, %c0_0, %c0_1] : memref<1x8x384xf32, #tpu.memory_space<vmem>>, vector<1x8x384xf32>
    %1 = vector.shape_cast %0 : vector<1x8x384xf32> to vector<8x384xf32>
    %c0_2 = arith.constant 0 : index
    %c0_3 = arith.constant 0 : index
    %2 = vector.load %arg2[%c0_2, %c0_3] : memref<384x192xf32, #tpu.memory_space<vmem>>, vector<384x192xf32>
    %cst = arith.constant dense<0.000000e+00> : vector<8x192xf32>
    %3 = tpu.matmul %1, %2, %cst {dimension_numbers = #tpu.dot_dimension_numbers<[1], [0], [0], [1], [0, 0, 1, 1], [], []>} : vector<8x384xf32>, vector<384x192xf32>, vector<8x192xf32> -> vector<8x192xf32>
    %4 = vector.extract_strided_slice %3 {offsets = [0, 0], sizes = [8, 64], strides = [1, 1]} : vector<8x192xf32> to vector<8x64xf32>
    %5 = vector.shape_cast %4 : vector<8x64xf32> to vector<1x8x64xf32>
    %6 = vector.extract_strided_slice %3 {offsets = [0, 64], sizes = [8, 64], strides = [1, 1]} : vector<8x192xf32> to vector<8x64xf32>
    %7 = vector.shape_cast %6 : vector<8x64xf32> to vector<1x8x64xf32>
    %8 = vector.extract_strided_slice %3 {offsets = [0, 128], sizes = [8, 64], strides = [1, 1]} : vector<8x192xf32> to vector<8x64xf32>
    %9 = vector.shape_cast %8 : vector<8x64xf32> to vector<1x8x64xf32>
    "tpu.trace_start"() <{level = 10 : i32, message = "bqd,bkd->bqk"}> : () -> ()
    %cst_4 = arith.constant dense<0.000000e+00> : vector<1x8x8xf32>
    %10 = tpu.matmul %5, %7, %cst_4 {dimension_numbers = #tpu.dot_dimension_numbers<[2], [2], [1], [1], [0, 0, 0, 1, 1, 1], [0], [0]>} : vector<1x8x64xf32>, vector<1x8x64xf32>, vector<1x8x8xf32> -> vector<1x8x8xf32>
    "tpu.trace_stop"() : () -> ()
    %cst_5 = arith.constant 1.250000e-01 : f32
    %11 = vector.broadcast %cst_5 : f32 to vector<1x8x8xf32>
    %12 = arith.mulf %10, %11 : vector<1x8x8xf32>
    %c0_6 = arith.constant 0 : index
    %c0_7 = arith.constant 0 : index
    %13 = vector.load %arg3[%c0_6, %c0_7] : memref<8x8xf32, #tpu.memory_space<vmem>>, vector<8x8xf32>
    %14 = vector.shape_cast %13 : vector<8x8xf32> to vector<1x8x8xf32>
    %15 = arith.addf %12, %14 : vector<1x8x8xf32>
    %cst_8 = arith.constant dense<0xFF800000> : vector<1x8xf32>
    %16 = vector.multi_reduction <maximumf>, %15, %cst_8 [2] : vector<1x8x8xf32> to vector<1x8xf32>
    %17 = vector.shape_cast %16 : vector<1x8xf32> to vector<1x8x1xf32>
    %18 = vector.broadcast %17 : vector<1x8x1xf32> to vector<1x8x8xf32>
    %19 = arith.subf %15, %18 : vector<1x8x8xf32>
    %20 = math.exp %19 : vector<1x8x8xf32>
    %cst_9 = arith.constant dense<0.000000e+00> : vector<1x8xf32>
    %21 = vector.multi_reduction <add>, %20, %cst_9 [2] : vector<1x8x8xf32> to vector<1x8xf32>
    %22 = vector.shape_cast %21 : vector<1x8xf32> to vector<1x8x1xf32>
    %23 = tpu.reciprocal %22 {approx = true} : vector<1x8x1xf32> -> vector<1x8x1xf32>
    %24 = vector.broadcast %23 : vector<1x8x1xf32> to vector<1x8x8xf32>
    %25 = arith.mulf %20, %24 : vector<1x8x8xf32>
    "tpu.trace_start"() <{level = 10 : i32, message = "bqk,bkd->bqd"}> : () -> ()
    %cst_10 = arith.constant dense<0.000000e+00> : vector<1x8x64xf32>
    %26 = tpu.matmul %25, %9, %cst_10 {dimension_numbers = #tpu.dot_dimension_numbers<[2], [1], [1], [2], [0, 0, 0, 1, 1, 2], [0], [0]>} : vector<1x8x8xf32>, vector<1x8x64xf32>, vector<1x8x64xf32> -> vector<1x8x64xf32>
    "tpu.trace_stop"() : () -> ()
    %c0_11 = arith.constant 0 : index
    %c0_12 = arith.constant 0 : index
    %c0_13 = arith.constant 0 : index
    %27 = vector.load %arg4[%c0_11, %c0_12, %c0_13] : memref<1x8x64xf32, #tpu.memory_space<vmem>>, vector<1x8x64xf32>
    tpu.vector_store %arg4[%c0_11, %c0_12, %c0_13], %26 {strides = array<i32>} : memref<1x8x64xf32, #tpu.memory_space<vmem>>, vector<1x8x64xf32>,
    return
  }
  func.func @transform_0(%arg0: i32) -> (i32, i32, i32) {
    %c0_i32 = arith.constant 0 : i32
    %c0_i32_0 = arith.constant 0 : i32
    %c0_i32_1 = arith.constant 0 : i32
    return %arg0, %c0_i32, %c0_i32_0 : i32, i32, i32
  }
  func.func @transform_1(%arg0: i32) -> (i32, i32) {
    %c0_i32 = arith.constant 0 : i32
    %c0_i32_0 = arith.constant 0 : i32
    %c0_i32_1 = arith.constant 0 : i32
    return %c0_i32, %c0_i32_0 : i32, i32
  }
  func.func @transform_2(%arg0: i32) -> (i32, i32) {
    %c0_i32 = arith.constant 0 : i32
    %c0_i32_0 = arith.constant 0 : i32
    %c0_i32_1 = arith.constant 0 : i32
    return %c0_i32, %c0_i32_0 : i32, i32
  }
  func.func @transform_3(%arg0: i32) -> (i32, i32, i32) {
    %c0_i32 = arith.constant 0 : i32
    %c0_i32_0 = arith.constant 0 : i32
    %c0_i32_1 = arith.constant 0 : i32
    return %arg0, %c0_i32, %c0_i32_0 : i32, i32, i32
  }
}

</mosaic_0001>

<llo_original>
// kernel: tpu_custom_call.1
$region0: #{tpu_custom_call.1}
  #allocation0 [shape = 'u32[]', space=smem, size = 0x4, offset = 0x4, fixed_abs, tag = 'smem constant byte address 0x4 - core index']
  #allocation1 [shape = 'u32[72,128]{1,0:T(1,128)}', space=vmem, size = 0x9000, scoped, tag = 'internal scratch']
  %s0 = inlined_call_operand.vmem [shape: f32[2,8,384], index: 0, kind: input, shape index: {}]
  %s1 = inlined_call_operand.vmem [shape: f32[384,192], index: 1, kind: input, shape index: {}]
  %s2 = inlined_call_operand.vmem [shape: f32[8,8], index: 2, kind: input, shape index: {}]
  %s3 = inlined_call_operand.hbm [shape: f32[2,8,64], index: 3, kind: output, shape index: {}]
  %s4 = sld [smem:[#allocation0]]
  $region45: #{tpu_custom_call.1} parent=0
    _
  %s6 = ssub.s32 1, %s4
  %s7 = scalar_select 0, %s6, %s4
  $region1: #{tpu_custom_call.1} parent=0
    #allocation2 [shape = 'u8[8192]{0}', space=vmem, size = 0x2000, scoped, tag = 'output window, operand 0']
    #allocation3 [shape = 's32[2]{0}', space=sflag, size = 0x8, scoped, tag = 'scoped memory for tpu_custom_call.1']
    %8 = vsyncpa [#allocation3], 0
    %s9 = scalar_lea.sflag [#allocation3], 1
    %10 = vsyncpa %s9, 0
    loop: start=0, step=1, limit=4
    $region2: #{tpu_custom_call.1} parent=1 // loop_pre_header
      _
    $region3: #{tpu_custom_call.1} parent=1 // loop_header
      %s12 = sphi 0, %s16
      %p13 = scmp.ge.s32.totalorder %s12, 4
      %s22 = sphi 0, %s24
      %s25 = sphi 0, %s22
      %s26 = sphi 0, %s25
      %s42 = sphi 0, %s26
      %s46 = sphi 0, %s46
      %s48 = sphi 0, %s46
      %s49 = sphi 0, %s48
      %s63 = sphi 0, %s49
      %s67 = sphi 0, %s67
      %s69 = sphi 0, %s67
      %s70 = sphi 0, %s69
      %s84 = sphi 0, %s70
      %s90 = sphi 0, %s92
      %s93 = sphi 0, %s90
      %s94 = sphi 0, %s93
      %s110 = sphi 0, %s94
    $region4: #{tpu_custom_call.1} parent=1 // loop_header_branch
      %15 = sbr.rel (%p13) target = $region8
    $region5: #{tpu_custom_call.1} parent=1 // loop_body
      %s17 = ssub.s32 %s12, 1
      %s18 = ssub.s32 %s12, 2
      %s19 = sadd.s32 %s12, 1
      %s20 = ssub.s32 %s12, %s19
      %p21 = scmp.eq.s32.totalorder %s20, 0
      %s23 = sadd.s32 %s22, 1
      %s24 = scalar_select %p21, %s22, %s23
      %p27 = pneg %p21
      %p28 = scmp.eq.s32.totalorder %s12, 1
      %p29 = por %p27, %p28
      %p30 = scmp.ne.s32.totalorder %s22, %s25
      %p31 = scmp.eq.s32.totalorder %s12, 0
      %p32 = por %p30, %p31
      %p33 = scmp.ne.s32.totalorder %s22, %s25
      %p34 = scmp.eq.s32.totalorder %s17, 1
      %p35 = por %p33, %p34
      %p36 = scmp.ne.s32.totalorder %s25, %s26
      %p37 = scmp.eq.s32.totalorder %s17, 0
      %p38 = por %p36, %p37
      %p39 = scmp.ne.s32.totalorder %s25, %s26
      %p40 = scmp.eq.s32.totalorder %s18, 1
      %p41 = por %p39, %p40
      %p43 = scmp.ne.s32.totalorder %s26, %s42
      %p44 = scmp.eq.s32.totalorder %s18, 0
      %p45 = por %p43, %p44
      %s47 = sadd.s32 %s46, 1
      %p50 = scmp.eq.s32.totalorder %s12, 1
      %p51 = scmp.ne.s32.totalorder %s46, %s48
      %p52 = scmp.eq.s32.totalorder %s12, 0
      %p53 = por %p51, %p52
      %p54 = scmp.ne.s32.totalorder %s46, %s48
      %p55 = scmp.eq.s32.totalorder %s17, 1
      %p56 = por %p54, %p55
      %p57 = scmp.ne.s32.totalorder %s48, %s49
      %p58 = scmp.eq.s32.totalorder %s17, 0
      %p59 = por %p57, %p58
      %p60 = scmp.ne.s32.totalorder %s48, %s49
      %p61 = scmp.eq.s32.totalorder %s18, 1
      %p62 = por %p60, %p61
      %p64 = scmp.ne.s32.totalorder %s49, %s63
      %p65 = scmp.eq.s32.totalorder %s18, 0
      %p66 = por %p64, %p65
      %s68 = sadd.s32 %s67, 1
      %p71 = scmp.eq.s32.totalorder %s12, 1
      %p72 = scmp.ne.s32.totalorder %s67, %s69
      %p73 = scmp.eq.s32.totalorder %s12, 0
      %p74 = por %p72, %p73
      %p75 = scmp.ne.s32.totalorder %s67, %s69
      %p76 = scmp.eq.s32.totalorder %s17, 1
      %p77 = por %p75, %p76
      %p78 = scmp.ne.s32.totalorder %s69, %s70
      %p79 = scmp.eq.s32.totalorder %s17, 0
      %p80 = por %p78, %p79
      %p81 = scmp.ne.s32.totalorder %s69, %s70
      %p82 = scmp.eq.s32.totalorder %s18, 1
      %p83 = por %p81, %p82
      %p85 = scmp.ne.s32.totalorder %s70, %s84
      %p86 = scmp.eq.s32.totalorder %s18, 0
      %p87 = por %p85, %p86
      %s88 = ssub.s32 %s12, %s19
      %p89 = scmp.eq.s32.totalorder %s88, 0
      %s91 = sadd.s32 %s90, 1
      %s92 = scalar_select %p89, %s90, %s91
      %p95 = pneg %p89
      %p96 = scmp.eq.s32.totalorder %s12, 1
      %p97 = por %p95, %p96
      %p98 = scmp.ne.s32.totalorder %s90, %s93
      %p99 = scmp.eq.s32.totalorder %s12, 0
      %p100 = por %p98, %p99
      %p101 = scmp.ne.s32.totalorder %s90, %s93
      %p102 = scmp.eq.s32.totalorder %s17, 1
      %p103 = por %p101, %p102
      %p104 = scmp.ne.s32.totalorder %s93, %s94
      %p105 = scmp.eq.s32.totalorder %s17, 0
      %p106 = por %p104, %p105
      %p107 = scmp.ne.s32.totalorder %s93, %s94
      %p108 = scmp.eq.s32.totalorder %s18, 1
      %p109 = por %p107, %p108
      %p111 = scmp.ne.s32.totalorder %s94, %s110
      %p112 = scmp.eq.s32.totalorder %s18, 0
      %p113 = por %p111, %p112
      %p114 = scmp.le.s32.totalorder 1, %s12
      %p115 = scmp.lt.s32.totalorder %s12, 3
      %p116 = pnand %p114, %p115
      %p117 = pneg %p116
      // Predicated region
      $region9: #{tpu_custom_call.1} parent=5 // pred_check
        _
      $region10: #{tpu_custom_call.1} parent=5 // pred_check_branch
        %119 = sbr.rel (%p116) target = $region12
      $region11: #{tpu_custom_call.1} parent=5 // pred_region
        %s120 = ssub.s32 %s12, 1
        // Predicated region
        $region13: #{tpu_custom_call.1} parent=11 // pred_check
          %p121 = pneg %p59
        $region14: #{tpu_custom_call.1} parent=11 // pred_check_branch
          %123 = sbr.rel (%p121) target = $region16
        $region15: #{tpu_custom_call.1} parent=11 // pred_region
          _
        $region16: #{tpu_custom_call.1} parent=11 // pred_fallthru
          _
        // Predicated region
        $region17: #{tpu_custom_call.1} parent=11 // pred_check
          %p124 = pneg %p80
        $region18: #{tpu_custom_call.1} parent=11 // pred_check_branch
          %126 = sbr.rel (%p124) target = $region20
        $region19: #{tpu_custom_call.1} parent=11 // pred_region
          _
        $region20: #{tpu_custom_call.1} parent=11 // pred_fallthru
          _
      $region12: #{tpu_custom_call.1} parent=5 // pred_fallthru
        _
      %p127 = scmp.lt.s32.totalorder %s12, 2
      // Predicated region
      $region21: #{tpu_custom_call.1} parent=5 // pred_check
        %p128 = pneg %p127
      $region22: #{tpu_custom_call.1} parent=5 // pred_check_branch
        %130 = sbr.rel (%p128) target = $region24
      $region23: #{tpu_custom_call.1} parent=5 // pred_region
        // Predicated region
        $region25: #{tpu_custom_call.1} parent=23 // pred_check
          %p131 = pneg %p32
        $region26: #{tpu_custom_call.1} parent=23 // pred_check_branch
          %133 = sbr.rel (%p131) target = $region28
        $region27: #{tpu_custom_call.1} parent=23 // pred_region
          %p134 = scmp.lt.s32.totalorder %s12, 1
          %s135 = scalar_select %p134, %s12, 1
          %s136 = smul.addr %s135, 3
          %s137 = smul.addr %s136, 8
          %s138 = scalar_lea.vmem %s0, %s137
        $region28: #{tpu_custom_call.1} parent=23 // pred_fallthru
          _
      $region24: #{tpu_custom_call.1} parent=5 // pred_fallthru
        _
      %p139 = scmp.le.s32.totalorder 1, %s12
      %p140 = scmp.lt.s32.totalorder %s12, 3
      %p141 = pnand %p139, %p140
      %p142 = pneg %p141
      // Predicated region
      $region29: #{tpu_custom_call.1} parent=5 // pred_check
        _
      $region30: #{tpu_custom_call.1} parent=5 // pred_check_branch
        %144 = sbr.rel (%p141) target = $region32
      $region31: #{tpu_custom_call.1} parent=5 // pred_region
        %s145 = ssub.s32 %s12, 1
        %p146 = scmp.lt.s32.totalorder %s17, 1
        %s147 = scalar_select %p146, %s17, 1
        %s148 = smul.addr %s147, 3
        %s149 = smul.addr %s148, 8
        %s150 = scalar_lea.vmem %s0, %s149
        %p151 = pneg %p38
        %p152 = pneg %p35
        %p153 = pneg %p59
        %p154 = pneg %p56
        %p155 = pneg %p80
        %p156 = pneg %p77
        %p157 = pneg %p106
        %p158 = pneg %p103
        %s159 = sand.u32 %s93, 1
        %s160 = scalar_lea.sflag [#allocation3], %s159
        %s161 = sand.u32 %s93, 1
        %s162 = smul.addr %s161, 8
        %s163 = scalar_lea.vmem [#allocation2], %s162
        %p164 = scmp.lt.s32.totalorder %s17, 1
        %s165 = scalar_select %p164, %s17, 1
        %s166 = smul.addr %s165, 3
        %s167 = smul.addr %s166, 8
        %s168 = scalar_lea.vmem %s0, %s167
        %v169 = vld [vmem:[%s168] sm:$0xff]
        %v170 = vld [vmem:[%s168 + $0x8] sm:$0xff]
        %v171 = vld [vmem:[%s168 + $0x10] sm:$0xff]
        %v172 = vld [vmem:[%s1] sm:$0xff]
        %v173 = vld [vmem:[%s1 + $0x8] sm:$0xff]
        %v174 = vld [vmem:[%s1 + $0x10] sm:$0xff]
        %v175 = vld [vmem:[%s1 + $0x18] sm:$0xff]
        %v176 = vld [vmem:[%s1 + $0x20] sm:$0xff]
        %v177 = vld [vmem:[%s1 + $0x28] sm:$0xff]
        %v178 = vld [vmem:[%s1 + $0x30] sm:$0xff]
        %v179 = vld [vmem:[%s1 + $0x38] sm:$0xff]
        %v180 = vld [vmem:[%s1 + $0x40] sm:$0xff]
        %v181 = vld [vmem:[%s1 + $0x48] sm:$0xff]
        %v182 = vld [vmem:[%s1 + $0x50] sm:$0xff]
        %v183 = vld [vmem:[%s1 + $0x58] sm:$0xff]
        %v184 = vld [vmem:[%s1 + $0x60] sm:$0xff]
        %v185 = vld [vmem:[%s1 + $0x68] sm:$0xff]
        %v186 = vld [vmem:[%s1 + $0x70] sm:$0xff]
        %v187 = vld [vmem:[%s1 + $0x78] sm:$0xff]
        %v188 = vld [vmem:[%s1 + $0x80] sm:$0xff]
        %v189 = vld [vmem:[%s1 + $0x88] sm:$0xff]
        %v190 = vld [vmem:[%s1 + $0x90] sm:$0xff]
        %v191 = vld [vmem:[%s1 + $0x98] sm:$0xff]
        %v192 = vld [vmem:[%s1 + $0xa0] sm:$0xff]
        %v193 = vld [vmem:[%s1 + $0xa8] sm:$0xff]
        %v194 = vld [vmem:[%s1 + $0xb0] sm:$0xff]
        %v195 = vld [vmem:[%s1 + $0xb8] sm:$0xff]
        %v196 = vld [vmem:[%s1 + $0xc0] sm:$0xff]
        %v197 = vld [vmem:[%s1 + $0xc8] sm:$0xff]
        %v198 = vld [vmem:[%s1 + $0xd0] sm:$0xff]
        %v199 = vld [vmem:[%s1 + $0xd8] sm:$0xff]
        %v200 = vld [vmem:[%s1 + $0xe0] sm:$0xff]
        %v201 = vld [vmem:[%s1 + $0xe8] sm:$0xff]
        %v202 = vld [vmem:[%s1 + $0xf0] sm:$0xff]
        %v203 = vld [vmem:[%s1 + $0xf8] sm:$0xff]
        %v204 = vld [vmem:[%s1 + $0x100] sm:$0xff]
        %v205 = vld [vmem:[%s1 + $0x108] sm:$0xff]
        %v206 = vld [vmem:[%s1 + $0x110] sm:$0xff]
        %v207 = vld [vmem:[%s1 + $0x118] sm:$0xff]
        %v208 = vld [vmem:[%s1 + $0x120] sm:$0xff]
        %v209 = vld [vmem:[%s1 + $0x128] sm:$0xff]
        %v210 = vld [vmem:[%s1 + $0x130] sm:$0xff]
        %v211 = vld [vmem:[%s1 + $0x138] sm:$0xff]
        %v212 = vld [vmem:[%s1 + $0x140] sm:$0xff]
        %v213 = vld [vmem:[%s1 + $0x148] sm:$0xff]
        %v214 = vld [vmem:[%s1 + $0x150] sm:$0xff]
        %v215 = vld [vmem:[%s1 + $0x158] sm:$0xff]
        %v216 = vld [vmem:[%s1 + $0x160] sm:$0xff]
        %v217 = vld [vmem:[%s1 + $0x168] sm:$0xff]
        %v218 = vld [vmem:[%s1 + $0x170] sm:$0xff]
        %v219 = vld [vmem:[%s1 + $0x178] sm:$0xff]
        %v220 = vld [vmem:[%s1 + $0x180] sm:$0xff]
        %v221 = vld [vmem:[%s1 + $0x188] sm:$0xff]
        %v222 = vld [vmem:[%s1 + $0x190] sm:$0xff]
        %v223 = vld [vmem:[%s1 + $0x198] sm:$0xff]
        %v224 = vld [vmem:[%s1 + $0x1a0] sm:$0xff]
        %v225 = vld [vmem:[%s1 + $0x1a8] sm:$0xff]
        %v226 = vld [vmem:[%s1 + $0x1b0] sm:$0xff]
        %v227 = vld [vmem:[%s1 + $0x1b8] sm:$0xff]
        %v228 = vld [vmem:[%s1 + $0x1c0] sm:$0xff]
        %v229 = vld [vmem:[%s1 + $0x1c8] sm:$0xff]
        %v230 = vld [vmem:[%s1 + $0x1d0] sm:$0xff]
        %v231 = vld [vmem:[%s1 + $0x1d8] sm:$0xff]
        %v232 = vld [vmem:[%s1 + $0x1e0] sm:$0xff]
        %v233 = vld [vmem:[%s1 + $0x1e8] sm:$0xff]
        %v234 = vld [vmem:[%s1 + $0x1f0] sm:$0xff]
        %v235 = vld [vmem:[%s1 + $0x1f8] sm:$0xff]
        %v236 = vld [vmem:[%s1 + $0x200] sm:$0xff]
        %v237 = vld [vmem:[%s1 + $0x208] sm:$0xff]
        %v238 = vld [vmem:[%s1 + $0x210] sm:$0xff]
        %v239 = vld [vmem:[%s1 + $0x218] sm:$0xff]
        %v240 = vld [vmem:[%s1 + $0x220] sm:$0xff]
        %v241 = vld [vmem:[%s1 + $0x228] sm:$0xff]
        %v242 = vld [vmem:[%s1 + $0x230] sm:$0xff]
        %v243 = vld [vmem:[%s1 + $0x238] sm:$0xff]
        %v244 = vld [vmem:[%s1 + $0x240] sm:$0xff]
        %v245 = vld [vmem:[%s1 + $0x248] sm:$0xff]
        %v246 = vld [vmem:[%s1 + $0x250] sm:$0xff]
        %v247 = vld [vmem:[%s1 + $0x258] sm:$0xff]
        %v248 = vld [vmem:[%s1 + $0x260] sm:$0xff]
        %v249 = vld [vmem:[%s1 + $0x268] sm:$0xff]
        %v250 = vld [vmem:[%s1 + $0x270] sm:$0xff]
        %v251 = vld [vmem:[%s1 + $0x278] sm:$0xff]
        %v252 = vld [vmem:[%s1 + $0x280] sm:$0xff]
        %v253 = vld [vmem:[%s1 + $0x288] sm:$0xff]
        %v254 = vld [vmem:[%s1 + $0x290] sm:$0xff]
        %v255 = vld [vmem:[%s1 + $0x298] sm:$0xff]
        %v256 = vld [vmem:[%s1 + $0x2a0] sm:$0xff]
        %v257 = vld [vmem:[%s1 + $0x2a8] sm:$0xff]
        %v258 = vld [vmem:[%s1 + $0x2b0] sm:$0xff]
        %v259 = vld [vmem:[%s1 + $0x2b8] sm:$0xff]
        %v260 = vld [vmem:[%s1 + $0x2c0] sm:$0xff]
        %v261 = vld [vmem:[%s1 + $0x2c8] sm:$0xff]
        %v262 = vld [vmem:[%s1 + $0x2d0] sm:$0xff]
        %v263 = vld [vmem:[%s1 + $0x2d8] sm:$0xff]
        %v264 = vld [vmem:[%s1 + $0x2e0] sm:$0xff]
        %v265 = vld [vmem:[%s1 + $0x2e8] sm:$0xff]
        %v266 = vld [vmem:[%s1 + $0x2f0] sm:$0xff]
        %v267 = vld [vmem:[%s1 + $0x2f8] sm:$0xff]
        %268 = vmatpush.msra.mxu0 %v202
        %269 = vmatpush.msra.mxu0 %v200
        %270 = vmatpush.msra.mxu0 %v198
        %271 = vmatpush.msra.mxu0 %v196
        %272 = vmatpush.msra.mxu0 %v194
        %273 = vmatpush.msra.mxu0 %v192
        %274 = vmatpush.msra.mxu0 %v190
        %275 = vmatpush.msra.mxu0 %v188
        %276 = vmatpush.msra.mxu0 %v186
        %277 = vmatpush.msra.mxu0 %v184
        %278 = vmatpush.msra.mxu0 %v182
        %279 = vmatpush.msra.mxu0 %v180
        %280 = vmatpush.msra.mxu0 %v178
        %281 = vmatpush.msra.mxu0 %v176
        %282 = vmatpush.msra.mxu0 %v174
        %283 = vmatpush.msra.mxu0 %v172
        %284 = vmatmul.f32.gmra.mxu0 %v169
        %v285 = vpop.f32.mrf.mxu0
        %v286 = vadd.f32 0.0, %v285
        %287 = vdwg.mxu0
        %288 = vmatpush.msra.mxu0 %v234
        %289 = vmatpush.msra.mxu0 %v232
        %290 = vmatpush.msra.mxu0 %v230
        %291 = vmatpush.msra.mxu0 %v228
        %292 = vmatpush.msra.mxu0 %v226
        %293 = vmatpush.msra.mxu0 %v224
        %294 = vmatpush.msra.mxu0 %v222
        %295 = vmatpush.msra.mxu0 %v220
        %296 = vmatpush.msra.mxu0 %v218
        %297 = vmatpush.msra.mxu0 %v216
        %298 = vmatpush.msra.mxu0 %v214
        %299 = vmatpush.msra.mxu0 %v212
        %300 = vmatpush.msra.mxu0 %v210
        %301 = vmatpush.msra.mxu0 %v208
        %302 = vmatpush.msra.mxu0 %v206
        %303 = vmatpush.msra.mxu0 %v204
        %304 = vmatmul.f32.gmra.mxu0 %v170
        %v305 = vpop.f32.mrf.mxu0
        %v306 = vadd.f32 %v286, %v305
        %307 = vdwg.mxu0
        %308 = vmatpush.msra.mxu0 %v266
        %309 = vmatpush.msra.mxu0 %v264
        %310 = vmatpush.msra.mxu0 %v262
        %311 = vmatpush.msra.mxu0 %v260
        %312 = vmatpush.msra.mxu0 %v258
        %313 = vmatpush.msra.mxu0 %v256
        %314 = vmatpush.msra.mxu0 %v254
        %315 = vmatpush.msra.mxu0 %v252
        %316 = vmatpush.msra.mxu0 %v250
        %317 = vmatpush.msra.mxu0 %v248
        %318 = vmatpush.msra.mxu0 %v246
        %319 = vmatpush.msra.mxu0 %v244
        %320 = vmatpush.msra.mxu0 %v242
        %321 = vmatpush.msra.mxu0 %v240
        %322 = vmatpush.msra.mxu0 %v238
        %323 = vmatpush.msra.mxu0 %v236
        %324 = vmatmul.f32.gmra.mxu0 %v171
        %v325 = vpop.f32.mrf.mxu0
        %v326 = vadd.f32 %v306, %v325
        %327 = vdwg.mxu0
        %328 = vmatpush.msra.mxu0 %v203
        %329 = vmatpush.msra.mxu0 %v201
        %330 = vmatpush.msra.mxu0 %v199
        %331 = vmatpush.msra.mxu0 %v197
        %332 = vmatpush.msra.mxu0 %v195
        %333 = vmatpush.msra.mxu0 %v193
        %334 = vmatpush.msra.mxu0 %v191
        %335 = vmatpush.msra.mxu0 %v189
        %336 = vmatpush.msra.mxu0 %v187
        %337 = vmatpush.msra.mxu0 %v185
        %338 = vmatpush.msra.mxu0 %v183
        %339 = vmatpush.msra.mxu0 %v181
        %340 = vmatpush.msra.mxu0 %v179
        %341 = vmatpush.msra.mxu0 %v177
        %342 = vmatpush.msra.mxu0 %v175
        %343 = vmatpush.msra.mxu0 %v173
        %344 = vmatmul.f32.gmra.mxu0 %v169
        %v345 = vpop.f32.mrf.mxu0
        %v346 = vadd.f32 0.0, %v345
        %347 = vdwg.mxu0
        %348 = vmatpush.msra.mxu0 %v235
        %349 = vmatpush.msra.mxu0 %v233
        %350 = vmatpush.msra.mxu0 %v231
        %351 = vmatpush.msra.mxu0 %v229
        %352 = vmatpush.msra.mxu0 %v227
        %353 = vmatpush.msra.mxu0 %v225
        %354 = vmatpush.msra.mxu0 %v223
        %355 = vmatpush.msra.mxu0 %v221
        %356 = vmatpush.msra.mxu0 %v219
        %357 = vmatpush.msra.mxu0 %v217
        %358 = vmatpush.msra.mxu0 %v215
        %359 = vmatpush.msra.mxu0 %v213
        %360 = vmatpush.msra.mxu0 %v211
        %361 = vmatpush.msra.mxu0 %v209
        %362 = vmatpush.msra.mxu0 %v207
        %363 = vmatpush.msra.mxu0 %v205
        %364 = vmatmul.f32.gmra.mxu0 %v170
        %v365 = vpop.f32.mrf.mxu0
        %v366 = vadd.f32 %v346, %v365
        %367 = vdwg.mxu0
        %368 = vmatpush.msra.mxu0 %v267
        %369 = vmatpush.msra.mxu0 %v265
        %370 = vmatpush.msra.mxu0 %v263
        %371 = vmatpush.msra.mxu0 %v261
        %372 = vmatpush.msra.mxu0 %v259
        %373 = vmatpush.msra.mxu0 %v257
        %374 = vmatpush.msra.mxu0 %v255
        %375 = vmatpush.msra.mxu0 %v253
        %376 = vmatpush.msra.mxu0 %v251
        %377 = vmatpush.msra.mxu0 %v249
        %378 = vmatpush.msra.mxu0 %v247
        %379 = vmatpush.msra.mxu0 %v245
        %380 = vmatpush.msra.mxu0 %v243
        %381 = vmatpush.msra.mxu0 %v241
        %382 = vmatpush.msra.mxu0 %v239
        %383 = vmatpush.msra.mxu0 %v237
        %384 = vmatmul.f32.gmra.mxu0 %v171
        %v385 = vpop.f32.mrf.mxu0
        %v386 = vadd.f32 %v366, %v385
        %387 = vdwg.mxu0
        %389 = vrot.lane.b32.xlu0 %v326, 64
        %v390 = vpop.permute.xlu0 %389
        %vm391 = vcmask 523264
        %v392 = vsel %vm391, %v326, 0
        %v394 = vsel %vm391, %v390, 0
        %396 = vmatpush.xpose.msra.mxu0 0.0
        %397 = vmatpush.xpose.msra.mxu0 0.0
        %398 = vmatpush.xpose.msra.mxu0 0.0
        %399 = vmatpush.xpose.msra.mxu0 0.0
        %400 = vmatpush.xpose.msra.mxu0 0.0
        %401 = vmatpush.xpose.msra.mxu0 0.0
        %402 = vmatpush.xpose.msra.mxu0 0.0
        %403 = vmatpush.xpose.msra.mxu0 0.0
        %404 = vmatpush.xpose.msra.mxu0 0.0
        %405 = vmatpush.xpose.msra.mxu0 0.0
        %406 = vmatpush.xpose.msra.mxu0 0.0
        %407 = vmatpush.xpose.msra.mxu0 0.0
        %408 = vmatpush.xpose.msra.mxu0 0.0
        %409 = vmatpush.xpose.msra.mxu0 0.0
        %410 = vmatpush.xpose.msra.mxu0 0.0
        %411 = vmatpush.xpose.msra.mxu0 %v394
        %412 = vmatmul.f32.gmra.mxu0 %v392
        %v413 = vpop.f32.mrf.mxu0
        %v414 = vadd.f32 0.0, %v413
        %415 = vdwg.mxu0
        %v416 = vmul.f32 %v414, 0.125
        %v417 = vld [vmem:[%s2] sm:$0xff]
        %v418 = vadd.f32 %v416, %v417
        %vm419 = vcmask 64512
        %v420 = vsel %vm419, %v418, -inf
        %421 = vmax.xlane.f32.xlu0 %v420
        %v422 = vpop.xlane.xlu0 %421
        %v423 = vsub.f32 %v418, %v422
        %v424 = vmul.f32 %v423, 1.442695
        %v425 = vpow.pop %v424
        %v426 = vsel %vm419, %v425, 0.0
        %427 = vadd.xlane.f32.xlu0 %v426
        %v428 = vpop.xlane.xlu0 %427
        %v429 = vrcp.pop %v428
        %v430 = vmul.f32 %v425, %v429
        %v432 = vsel %vm419, %v430, 0
        %434 = vmatpush.msra.mxu0 0.0
        %435 = vmatpush.msra.mxu0 0.0
        %436 = vmatpush.msra.mxu0 0.0
        %437 = vmatpush.msra.mxu0 0.0
        %438 = vmatpush.msra.mxu0 0.0
        %439 = vmatpush.msra.mxu0 0.0
        %440 = vmatpush.msra.mxu0 0.0
        %441 = vmatpush.msra.mxu0 0.0
        %442 = vmatpush.msra.mxu0 0.0
        %443 = vmatpush.msra.mxu0 0.0
        %444 = vmatpush.msra.mxu0 0.0
        %445 = vmatpush.msra.mxu0 0.0
        %446 = vmatpush.msra.mxu0 0.0
        %447 = vmatpush.msra.mxu0 0.0
        %448 = vmatpush.msra.mxu0 0.0
        %449 = vmatpush.msra.mxu0 %v386
        %450 = vmatmul.f32.gmra.mxu0 %v432
        %v451 = vpop.f32.mrf.mxu0
        %v452 = vadd.f32 0.0, %v451
        %453 = vdwg.mxu0
        %454 = vst.msk [vmem:[%s163] sm:$0xff] %vm391, %v452
        %s455 = sand.u32 %s93, 1
        %s456 = scalar_lea.sflag [#allocation3], %s455
        %s457 = sand.u32 %s93, 1
        %s458 = smul.addr %s457, 8
        %s459 = scalar_lea.vmem [#allocation2], %s458
        // Predicated region
        $region33: #{tpu_custom_call.1} parent=31 // pred_check
          %p460 = pneg %p103
        $region34: #{tpu_custom_call.1} parent=31 // pred_check_branch
          %462 = sbr.rel (%p460) target = $region36
        $region35: #{tpu_custom_call.1} parent=31 // pred_region
          %464 = vsyncadd %s456, 0
          %s465 = smul.addr %s17, 8
          %s466 = scalar_lea.hbm %s3, %s465
          %s468 = sshll.u32 %s459, 4
          %s469 = int_to_ptr.vmem [resolvable:$true] %s468
          %s470 = sshll.u32 %s466, 4
          %s471 = int_to_ptr.hbm [resolvable:$true] %s470
          %473 = dma.vmem_to_hbm [thread:$0]  %s469, 128, %s471, %s456
        $region36: #{tpu_custom_call.1} parent=31 // pred_fallthru
          _
      $region32: #{tpu_custom_call.1} parent=5 // pred_fallthru
        _
      %p474 = scmp.le.s32.totalorder 2, %s12
      // Predicated region
      $region37: #{tpu_custom_call.1} parent=5 // pred_check
        %p475 = pneg %p474
      $region38: #{tpu_custom_call.1} parent=5 // pred_check_branch
        %477 = sbr.rel (%p475) target = $region40
      $region39: #{tpu_custom_call.1} parent=5 // pred_region
        %s478 = ssub.s32 %s12, 2
        // Predicated region
        $region41: #{tpu_custom_call.1} parent=39 // pred_check
          %p479 = pneg %p109
        $region42: #{tpu_custom_call.1} parent=39 // pred_check_branch
          %481 = sbr.rel (%p479) target = $region44
        $region43: #{tpu_custom_call.1} parent=39 // pred_region
          %s482 = sand.u32 %s94, 1
          %s483 = scalar_lea.sflag [#allocation3], %s482
          %s484 = sand.u32 %s94, 1
          %s485 = smul.addr %s484, 8
          %s486 = scalar_lea.vmem [#allocation2], %s485
          %488 = dma.done %s483, 128
        $region44: #{tpu_custom_call.1} parent=39 // pred_fallthru
          _
      $region40: #{tpu_custom_call.1} parent=5 // pred_fallthru
        _
    $region6: #{tpu_custom_call.1} parent=1 // loop_footer
      %s16 = sadd.s32 1, %s12
    $region7: #{tpu_custom_call.1} parent=1 // loop_footer_branch
      %11 = sbr.rel target = $region3
    $region8: #{tpu_custom_call.1} parent=1 // loop_exit
      _
    %489 = vsyncpa [#allocation3], 1
    %s490 = scalar_lea.sflag [#allocation3], 1
    %491 = vsyncpa %s490, 1

</llo_original>
